<compile_context>
chip_gen: v6e
topology: v6e:2x2x1
jax: 0.10.0
libtpu: 0.0.40
codegen_flags: <defaults>
</compile_context>

<pallas_src>
import functools
import math

import jax
import jax.numpy as jnp
from jax import lax
from jax.experimental import pallas as pl
from jax.experimental.pallas import tpu as pltpu

_EPS = 1e-12  # matches torch.nn.functional.normalize default eps


def _vmem_budget(max_block_bytes=None):
    """(vmem_limit_bytes, per-block byte budget), generation aware."""
    cap = 64 * 1024 * 1024  # conservative default (v7x per-core VMEM)
    try:
        cap = int(pltpu.get_tpu_info().vmem_capacity_bytes)
    except Exception:
        pass
    limit = min((cap * 3) // 4, 96 * 1024 * 1024)          # 48 MiB v7x, 96 MiB v5e/v6e
    if max_block_bytes is None:
        block = min(limit // 4, 24 * 1024 * 1024)          # 12 MiB v7x, 24 MiB v5e/v6e
    else:
        block = int(max_block_bytes)
    return limit, block


def _pick_batch_tile(n, c, hw, itemsize, max_block_bytes):
    """How many samples to fold into one streamed block (multiple of 8, or n)."""
    lane_min = min(hw, 128)
    tb_cap = max(max_block_bytes // max(c * lane_min * itemsize, 1), 8)
    if n <= min(128, tb_cap):
        return n                       # single batch tile; block dim == full dim
    for t in (128, 64, 32, 16, 8):
        if t <= tb_cap:
            return t
    return 8


def _pick_hw_tile(hw, c, tb, itemsize, max_block_bytes):
    """Largest spatial tile (full HW or 128-aligned) within the block budget."""
    budget_elems = max(max_block_bytes // max(tb * c * itemsize, 1), 128)
    if hw <= budget_elems:
        return hw                      # whole spatial extent in one tile
    return max((budget_elems // 128) * 128, 128)


def _norm_classifier_kernel(x_ref, wnt_ref, logits_ref, feat_ref, acc_ref,
                            *, inv_hw, pool, hw):
    # x_ref      : (TB, C, THW) slab of TB samples (spatial tile)
    # wnt_ref    : (C, A)       pre-normalized classifier weight, transposed
    # logits_ref : (TB, A)      cosine logits block (lane dense)
    # feat_ref   : (TB, C)      normalized pooled features block (lane dense)
    # acc_ref    : (TB, C)      f32 pooling accumulator (VMEM scratch)
    t = pl.program_id(1)
    n_t = pl.num_programs(1)
    thw = x_ref.shape[-1]

    x = x_ref[...].astype(jnp.float32)                        # (TB, C, THW)

    rem = hw % thw
    if rem != 0:
        # Last spatial tile hangs past HW: mask the padded lanes.
        lane = lax.broadcasted_iota(jnp.int32, x.shape, dimension=2)
        bound = jnp.where(t == n_t - 1, rem, thw)
        fill = 0.0 if pool == "avg" else -jnp.inf
        x = jnp.where(lane < bound, x, fill)

    if pool == "avg":
        partial = jnp.sum(x, axis=2)                           # (TB, C)
    else:
        partial = jnp.max(x, axis=2)

    @pl.when(t == 0)
    def _():
        if pool == "avg":
            acc_ref[...] = jnp.zeros_like(acc_ref)
        else:
            acc_ref[...] = jnp.full(acc_ref.shape, -jnp.inf, acc_ref.dtype)

    if pool == "avg":
        acc_ref[...] += partial
    else:
        acc_ref[...] = jnp.maximum(acc_ref[...], partial)

    @pl.when(t == n_t - 1)
    def _():
        feat = acc_ref[...]                                    # (TB, C) f32
        if pool == "avg":
            feat = feat * inv_hw
        # Row-wise L2 normalization: v / max(||v||, eps), as in F.normalize.
        nrm = jnp.sqrt(jnp.sum(feat * feat, axis=1, keepdims=True))   # (TB, 1)
        feat_n = feat / jnp.maximum(nrm, _EPS)
        feat_ref[...] = feat_n.astype(feat_ref.dtype)
        # One batched cosine matmul on the MXU per batch tile: (TB, C) @ (C, A).
        logits_ref[...] = jnp.dot(
            feat_n, wnt_ref[...].astype(jnp.float32),
            preferred_element_type=jnp.float32,
        ).astype(logits_ref.dtype)


def norm_classifier_forward(feature, logits_weight, label=None, *, pool="avg",
                            max_block_bytes=None):
    """Pallas equivalent of NormClassifier.forward.

    feature       : (N, C, H, W) backbone feature map (NCHW, like PyTorch)
    logits_weight : (A, C)       cosine-classifier weight (self.logits)
    returns ([cosine_logits (N, A)], feat_n (N, C)) -- same structure as PyTorch.
    """
    del label  # unused at inference (interface parity with the PyTorch forward)
    assert pool in ("avg", "max")
    n, c, h, w = feature.shape
    a = logits_weight.shape[0]
    hw = h * w
    itemsize = jnp.dtype(feature.dtype).itemsize

    vmem_limit, block_budget = _vmem_budget(max_block_bytes)
    tb = _pick_batch_tile(n, c, hw, itemsize, block_budget)
    thw = _pick_hw_tile(hw, c, tb, itemsize, block_budget)
    n_bt = pl.cdiv(n, tb)
    n_t = pl.cdiv(hw, thw)
    n_pad = n_bt * tb

    x = feature.reshape(n, c, hw)       # free metadata reshape, no transpose
    if n_pad != n:
        # Rare path (N > 128 and not tileable by a multiple of 8): zero-pad batch.
        x = jnp.pad(x, ((0, n_pad - n), (0, 0), (0, 0)))

    # Hoisted weight normalization: done ONCE here, not per sample in the kernel.
    w32 = logits_weight.astype(jnp.float32)
    w_n = w32 / jnp.maximum(
        jnp.sqrt(jnp.sum(w32 * w32, axis=1, keepdims=True)), _EPS)
    wnt = w_n.T                          # (C, A), resident in VMEM across the grid

    kernel = functools.partial(_norm_classifier_kernel,
                               inv_hw=1.0 / float(hw), pool=pool, hw=hw)

    logits_out, feat_out = pl.pallas_call(
        kernel,
        out_shape=(
            jax.ShapeDtypeStruct((n_pad, a), jnp.float32),
            jax.ShapeDtypeStruct((n_pad, c), feature.dtype),
        ),
        grid_spec=pltpu.PrefetchScalarGridSpec(
            num_scalar_prefetch=0,
            grid=(n_bt, n_t),
            in_specs=[
                # TB samples' spatial slab per step
                pl.BlockSpec((tb, c, thw), lambda b, t: (b, 0, t)),
                # pre-normalized weight, same block across the whole grid
                pl.BlockSpec((c, a), lambda b, t: (0, 0)),
            ],
            out_specs=(
                pl.BlockSpec((tb, a), lambda b, t: (b, 0)),
                pl.BlockSpec((tb, c), lambda b, t: (b, 0)),
            ),
            scratch_shapes=[pltpu.VMEM((tb, c), jnp.float32)],
        ),
        compiler_params=pltpu.CompilerParams(
            dimension_semantics=("parallel", "arbitrary"),
            vmem_limit_bytes=vmem_limit,
        ),
    )(x, wnt)

    cos = logits_out[:n] if n_pad != n else logits_out
    feat_n = feat_out[:n] if n_pad != n else feat_out
    return [cos], feat_n
    # TODO(synk): the constructor's `scale=30` is unused by the PyTorch forward,
    # so it is intentionally not applied here.


if __name__ == "__main__":
    key = jax.random.PRNGKey(0)
    kx, kw = jax.random.split(key)

    # Small shapes consistent with the module: feature map (N, C, H, W), weight
    # (nattr, C).  H*W = 400 is deliberately NOT a multiple of 128 so the
    # masked-remainder path can be exercised with a forced small tile below.
    N, C_IN, H, W = 2, 32, 16, 25
    NATTR = 8

    feature = jax.random.normal(kx, (N, C_IN, H, W), jnp.float32)
    stdv = 1.0 / math.sqrt(C_IN)
    logits_w = jax.random.uniform(kw, (NATTR, C_IN), jnp.float32,
                                  minval=-stdv, maxval=stdv)

    def ref_forward(feat_map, wgt, pool):
        f = feat_map.reshape(feat_map.shape[0], feat_map.shape[1], -1)
        pooled = f.mean(-1) if pool == "avg" else f.max(-1)
        fn = pooled / jnp.maximum(
            jnp.linalg.norm(pooled, axis=1, keepdims=True), _EPS)
        wn = wgt / jnp.maximum(
            jnp.linalg.norm(wgt, axis=1, keepdims=True), _EPS)
        return fn @ wn.T, fn

    # 1) Default tiling (single spatial tile).
    (cos_l, feat_n) = norm_classifier_forward(feature, logits_w)
    cos = cos_l[0]
    jax.block_until_ready((cos, feat_n))
    cos_ref, feat_n_ref = ref_forward(feature, logits_w, "avg")
    assert cos.shape == (N, NATTR) and feat_n.shape == (N, C_IN)
    assert jnp.allclose(feat_n, feat_n_ref, atol=1e-4, rtol=1e-4)
    assert jnp.allclose(cos, cos_ref, atol=1e-4, rtol=1e-4)

    # 2) Forced small block budget -> multi-step spatial accumulation + masked
    #    remainder (400 = 3*128 + 16).
    (cos_l2, feat_n2) = norm_classifier_forward(
        feature, logits_w, max_block_bytes=32 * 1024)
    cos2 = cos_l2[0]
    jax.block_until_ready((cos2, feat_n2))
    assert jnp.allclose(feat_n2, feat_n_ref, atol=1e-4, rtol=1e-4)
    assert jnp.allclose(cos2, cos_ref, atol=1e-4, rtol=1e-4)

    # 3) Max-pool variant with the same forced tiling.
    (cos_l3, feat_n3) = norm_classifier_forward(
        feature, logits_w, pool="max", max_block_bytes=32 * 1024)
    cos3 = cos_l3[0]
    jax.block_until_ready((cos3, feat_n3))
    cos_ref3, feat_n_ref3 = ref_forward(feature, logits_w, "max")
    assert jnp.allclose(feat_n3, feat_n_ref3, atol=1e-4, rtol=1e-4)
    assert jnp.allclose(cos3, cos_ref3, atol=1e-4, rtol=1e-4)

    print("KERNEL_OK")
</pallas_src>

<mosaic_0001>
module attributes {stable_mosaic.version = 11 : i64} {
  func.func @_norm_classifier_kernel(%arg0: i32, %arg1: i32, %arg2: memref<2x32x400xf32, #tpu.memory_space<vmem>>, %arg3: memref<32x8xf32, #tpu.memory_space<vmem>>, %arg4: memref<2x8xf32, #tpu.memory_space<vmem>>, %arg5: memref<2x32xf32, #tpu.memory_space<vmem>>, %arg6: memref<2x32xf32, #tpu.memory_space<vmem>>) attributes {dimension_semantics = [#tpu.dimension_semantics<parallel>, #tpu.dimension_semantics<arbitrary>], iteration_bounds = array<i64: 1, 1>, scalar_prefetch = 0 : i64, scratch_operands = 1 : i64, tpu.core_type = #tpu.core_type<tc>, window_params = [{transform_indices = @transform_0, window_bounds = array<i64: 2, 32, 400>}, {pipeline_mode = #tpu.pipeline_mode<synchronous>, transform_indices = @transform_1, window_bounds = array<i64: 32, 8>}, {transform_indices = @transform_2, window_bounds = array<i64: 2, 8>}, {transform_indices = @transform_3, window_bounds = array<i64: 2, 32>}]} {
    %c0 = arith.constant 0 : index
    %c0_0 = arith.constant 0 : index
    %c0_1 = arith.constant 0 : index
    %0 = vector.load %arg2[%c0, %c0_0, %c0_1] : memref<2x32x400xf32, #tpu.memory_space<vmem>>, vector<2x32x400xf32>
    %cst = arith.constant dense<0.000000e+00> : vector<2x32xf32>
    %1 = vector.multi_reduction <add>, %0, %cst [2] : vector<2x32x400xf32> to vector<2x32xf32>
    %c0_i32 = arith.constant 0 : i32
    %2 = arith.cmpi eq, %arg1, %c0_i32 : i32
    %3 = arith.extui %2 : i1 to i32
    %c0_i32_2 = arith.constant 0 : i32
    %4 = arith.cmpi ne, %3, %c0_i32_2 : i32
    scf.if %4 {
      %cst_9 = arith.constant 0.000000e+00 : f32
      %11 = vector.broadcast %cst_9 : f32 to vector<2x32xf32>
      %c0_10 = arith.constant 0 : index
      %c0_11 = arith.constant 0 : index
      %12 = vector.load %arg6[%c0_10, %c0_11] : memref<2x32xf32, #tpu.memory_space<vmem>>, vector<2x32xf32>
      tpu.vector_store %arg6[%c0_10, %c0_11], %11 {strides = array<i32>} : memref<2x32xf32, #tpu.memory_space<vmem>>, vector<2x32xf32>,
    } else {
    }
    %c0_3 = arith.constant 0 : index
    %c0_4 = arith.constant 0 : index
    %5 = vector.load %arg6[%c0_3, %c0_4] : memref<2x32xf32, #tpu.memory_space<vmem>>, vector<2x32xf32>
    %6 = arith.addf %5, %1 : vector<2x32xf32>
    %c0_5 = arith.constant 0 : index
    %c0_6 = arith.constant 0 : index
    %7 = vector.load %arg6[%c0_5, %c0_6] : memref<2x32xf32, #tpu.memory_space<vmem>>, vector<2x32xf32>
    tpu.vector_store %arg6[%c0_5, %c0_6], %6 {strides = array<i32>} : memref<2x32xf32, #tpu.memory_space<vmem>>, vector<2x32xf32>,
    %c0_i32_7 = arith.constant 0 : i32
    %8 = arith.cmpi eq, %arg1, %c0_i32_7 : i32
    %9 = arith.extui %8 : i1 to i32
    %c0_i32_8 = arith.constant 0 : i32
    %10 = arith.cmpi ne, %9, %c0_i32_8 : i32
    scf.if %10 {
      %c0_9 = arith.constant 0 : index
      %c0_10 = arith.constant 0 : index
      %11 = vector.load %arg6[%c0_9, %c0_10] : memref<2x32xf32, #tpu.memory_space<vmem>>, vector<2x32xf32>
      %cst_11 = arith.constant 2.500000e-03 : f32
      %12 = vector.broadcast %cst_11 : f32 to vector<2x32xf32>
      %13 = arith.mulf %11, %12 : vector<2x32xf32>
      %14 = arith.mulf %13, %13 : vector<2x32xf32>
      %cst_12 = arith.constant dense<0.000000e+00> : vector<2xf32>
      %15 = vector.multi_reduction <add>, %14, %cst_12 [1] : vector<2x32xf32> to vector<2xf32>
      %16 = vector.shape_cast %15 : vector<2xf32> to vector<2x1xf32>
      %17 = math.sqrt %16 : vector<2x1xf32>
      %cst_13 = arith.constant 9.99999996E-13 : f32
      %18 = vector.broadcast %cst_13 : f32 to vector<2x1xf32>
      %19 = arith.maximumf %17, %18 : vector<2x1xf32>
      %20 = vector.broadcast %19 : vector<2x1xf32> to vector<2x32xf32>
      %21 = arith.divf %13, %20 : vector<2x32xf32>
      %c0_14 = arith.constant 0 : index
      %c0_15 = arith.constant 0 : index
      %22 = vector.load %arg5[%c0_14, %c0_15] : memref<2x32xf32, #tpu.memory_space<vmem>>, vector<2x32xf32>
      tpu.vector_store %arg5[%c0_14, %c0_15], %21 {strides = array<i32>} : memref<2x32xf32, #tpu.memory_space<vmem>>, vector<2x32xf32>,
      %c0_16 = arith.constant 0 : index
      %c0_17 = arith.constant 0 : index
      %23 = vector.load %arg3[%c0_16, %c0_17] : memref<32x8xf32, #tpu.memory_space<vmem>>, vector<32x8xf32>
      %cst_18 = arith.constant dense<0.000000e+00> : vector<2x8xf32>
      %24 = tpu.matmul %21, %23, %cst_18 {dimension_numbers = #tpu.dot_dimension_numbers<[1], [0], [0], [1], [0, 0, 1, 1], [], []>} : vector<2x32xf32>, vector<32x8xf32>, vector<2x8xf32> -> vector<2x8xf32>
      %c0_19 = arith.constant 0 : index
      %c0_20 = arith.constant 0 : index
      %25 = vector.load %arg4[%c0_19, %c0_20] : memref<2x8xf32, #tpu.memory_space<vmem>>, vector<2x8xf32>
      tpu.vector_store %arg4[%c0_19, %c0_20], %24 {strides = array<i32>} : memref<2x8xf32, #tpu.memory_space<vmem>>, vector<2x8xf32>,
    } else {
    }
    return
  }
  func.func @transform_0(%arg0: i32, %arg1: i32) -> (i32, i32, i32) {
    %c0_i32 = arith.constant 0 : i32
    %c0_i32_0 = arith.constant 0 : i32
    return %arg0, %c0_i32, %arg1 : i32, i32, i32
  }
  func.func @transform_1(%arg0: i32, %arg1: i32) -> (i32, i32) {
    %c0_i32 = arith.constant 0 : i32
    %c0_i32_0 = arith.constant 0 : i32
    %c0_i32_1 = arith.constant 0 : i32
    return %c0_i32, %c0_i32_0 : i32, i32
  }
  func.func @transform_2(%arg0: i32, %arg1: i32) -> (i32, i32) {
    %c0_i32 = arith.constant 0 : i32
    %c0_i32_0 = arith.constant 0 : i32
    return %arg0, %c0_i32 : i32, i32
  }
  func.func @transform_3(%arg0: i32, %arg1: i32) -> (i32, i32) {
    %c0_i32 = arith.constant 0 : i32
    %c0_i32_0 = arith.constant 0 : i32
    return %arg0, %c0_i32 : i32, i32
  }
}

</mosaic_0001>

<llo_original>
// kernel: tpu_custom_call.1
$region0: #{tpu_custom_call.1}
  #allocation0 [shape = 'u32[]', space=smem, size = 0x4, offset = 0x4, fixed_abs, tag = 'smem constant byte address 0x4 - core index']
  #allocation1 [shape = 'u32[144,128]{1,0:T(1,128)}', space=vmem, size = 0x12000, scoped, tag = 'internal scratch']
  #allocation2 [shape = 'f32[2,32]{1,0:T(2,128)}', space=vmem, size = 0x400, scoped, tag = 'scratch operand']
  %s0 = inlined_call_operand.hbm [shape: f32[2,32,400], index: 0, kind: input, shape index: {}]
  %s1 = inlined_call_operand.vmem [shape: f32[32,8], index: 1, kind: input, shape index: {}]
  %s2 = inlined_call_operand.hbm [shape: f32[2,8], index: 2, kind: output, shape index: {0}]
  %s3 = inlined_call_operand.hbm [shape: f32[2,32], index: 3, kind: output, shape index: {1}]
  %4 = xla_tuple %s2, %s3
  %s5 = sld [smem:[#allocation0]]
  $region38: #{tpu_custom_call.1} parent=0
    _
  %s7 = ssub.s32 1, %s5
  %s8 = scalar_select 0, %s7, %s5
  $region1: #{tpu_custom_call.1} parent=0
    #allocation3 [shape = 'u8[131072]{0}', space=vmem, size = 0x20000, scoped, tag = 'input window, operand 0, single buffered']
    #allocation4 [shape = 's32[1]{0}', space=sflag, size = 0x4, scoped, tag = 'scoped memory for tpu_custom_call.1']
    #allocation5 [shape = 's32[1]{0}', space=sflag, size = 0x4, scoped, tag = 'scoped memory for tpu_custom_call.1']
    #allocation6 [shape = 'u8[1024]{0}', space=vmem, size = 0x400, scoped, tag = 'output window, operand 0, single buffered']
    #allocation7 [shape = 'u8[1024]{0}', space=vmem, size = 0x400, scoped, tag = 'output window, operand 1, single buffered']
    #allocation8 [shape = 's32[1]{0}', space=sflag, size = 0x4, scoped, tag = 'scoped memory for tpu_custom_call.1']
    %9 = vsyncpa [#allocation4], 0
    %10 = vsyncpa [#allocation5], 0
    %11 = vsyncpa [#allocation8], 0
    // Predicated region
    $region2: #{tpu_custom_call.1} parent=1 // pred_check
      _
    $region3: #{tpu_custom_call.1} parent=1 // pred_check_branch
      %13 = sbr.rel (0) target = $region5
    $region4: #{tpu_custom_call.1} parent=1 // pred_region
      %s15 = ssub.s32 4096, 4096
      %16 = vsyncadd [#allocation4], %s15
      %s17 = sshll.u32 [#allocation3], 4
      %s18 = int_to_ptr.vmem [resolvable:$true] %s17
      %23 = dma.hbm_to_vmem [thread:$0]  %s0, 4096, %s18, [#allocation4], 512, 512, 32
    $region5: #{tpu_custom_call.1} parent=1 // pred_fallthru
      _
    // Predicated region
    $region6: #{tpu_custom_call.1} parent=1 // pred_check
      _
    $region7: #{tpu_custom_call.1} parent=1 // pred_check_branch
      %25 = sbr.rel (0) target = $region9
    $region8: #{tpu_custom_call.1} parent=1 // pred_region
      _
    $region9: #{tpu_custom_call.1} parent=1 // pred_fallthru
      _
    // Predicated region
    $region10: #{tpu_custom_call.1} parent=1 // pred_check
      _
    $region11: #{tpu_custom_call.1} parent=1 // pred_check_branch
      %27 = sbr.rel (0) target = $region13
    $region12: #{tpu_custom_call.1} parent=1 // pred_region
      %28 = dma.done [#allocation4], 4096
    $region13: #{tpu_custom_call.1} parent=1 // pred_fallthru
      _
    %v29 = vld [vmem:[#allocation3] sm:$0xff]
    %v30 = vld [vmem:[#allocation3 + $0x8] sm:$0xff]
    %v31 = vld [vmem:[#allocation3 + $0x10] sm:$0xff]
    %v32 = vld [vmem:[#allocation3 + $0x18] sm:$0xff]
    %v33 = vld [vmem:[#allocation3 + $0x20] sm:$0xff]
    %v34 = vld [vmem:[#allocation3 + $0x28] sm:$0xff]
    %v35 = vld [vmem:[#allocation3 + $0x30] sm:$0xff]
    %v36 = vld [vmem:[#allocation3 + $0x38] sm:$0xff]
    %v37 = vld [vmem:[#allocation3 + $0x40] sm:$0xff]
    %v38 = vld [vmem:[#allocation3 + $0x48] sm:$0xff]
    %v39 = vld [vmem:[#allocation3 + $0x50] sm:$0xff]
    %v40 = vld [vmem:[#allocation3 + $0x58] sm:$0xff]
    %v41 = vld [vmem:[#allocation3 + $0x60] sm:$0xff]
    %v42 = vld [vmem:[#allocation3 + $0x68] sm:$0xff]
    %v43 = vld [vmem:[#allocation3 + $0x70] sm:$0xff]
    %v44 = vld [vmem:[#allocation3 + $0x78] sm:$0xff]
    %v45 = vld [vmem:[#allocation3 + $0x80] sm:$0xff]
    %v46 = vld [vmem:[#allocation3 + $0x88] sm:$0xff]
    %v47 = vld [vmem:[#allocation3 + $0x90] sm:$0xff]
    %v48 = vld [vmem:[#allocation3 + $0x98] sm:$0xff]
    %v49 = vld [vmem:[#allocation3 + $0xa0] sm:$0xff]
    %v50 = vld [vmem:[#allocation3 + $0xa8] sm:$0xff]
    %v51 = vld [vmem:[#allocation3 + $0xb0] sm:$0xff]
    %v52 = vld [vmem:[#allocation3 + $0xb8] sm:$0xff]
    %v53 = vld [vmem:[#allocation3 + $0xc0] sm:$0xff]
    %v54 = vld [vmem:[#allocation3 + $0xc8] sm:$0xff]
    %v55 = vld [vmem:[#allocation3 + $0xd0] sm:$0xff]
    %v56 = vld [vmem:[#allocation3 + $0xd8] sm:$0xff]
    %v57 = vld [vmem:[#allocation3 + $0xe0] sm:$0xff]
    %v58 = vld [vmem:[#allocation3 + $0xe8] sm:$0xff]
    %v59 = vld [vmem:[#allocation3 + $0xf0] sm:$0xff]
    %v60 = vld [vmem:[#allocation3 + $0xf8] sm:$0xff]
    %v61 = vadd.f32 %v29, %v30
    %v62 = vadd.f32 %v61, %v31
    %vm63 = vcmask 130048
    %v64 = vsel %vm63, %v32, 0.0
    %v65 = vadd.f32 %v62, %v64
    %66 = vadd.xlane.f32.xlu0 %v65
    %v67 = vpop.xlane.xlu0 %66
    %v68 = vadd.f32 %v33, %v34
    %v69 = vadd.f32 %v68, %v35
    %v70 = vsel %vm63, %v36, 0.0
    %v71 = vadd.f32 %v69, %v70
    %72 = vadd.xlane.f32.xlu0 %v71
    %v73 = vpop.xlane.xlu0 %72
    %v74 = vadd.f32 %v37, %v38
    %v75 = vadd.f32 %v74, %v39
    %v76 = vsel %vm63, %v40, 0.0
    %v77 = vadd.f32 %v75, %v76
    %78 = vadd.xlane.f32.xlu0 %v77
    %v79 = vpop.xlane.xlu0 %78
    %v80 = vadd.f32 %v41, %v42
    %v81 = vadd.f32 %v80, %v43
    %v82 = vsel %vm63, %v44, 0.0
    %v83 = vadd.f32 %v81, %v82
    %84 = vadd.xlane.f32.xlu0 %v83
    %v85 = vpop.xlane.xlu0 %84
    %v86 = vadd.f32 %v45, %v46
    %v87 = vadd.f32 %v86, %v47
    %v88 = vsel %vm63, %v48, 0.0
    %v89 = vadd.f32 %v87, %v88
    %90 = vadd.xlane.f32.xlu0 %v89
    %v91 = vpop.xlane.xlu0 %90
    %v92 = vadd.f32 %v49, %v50
    %v93 = vadd.f32 %v92, %v51
    %v94 = vsel %vm63, %v52, 0.0
    %v95 = vadd.f32 %v93, %v94
    %96 = vadd.xlane.f32.xlu0 %v95
    %v97 = vpop.xlane.xlu0 %96
    %v98 = vadd.f32 %v53, %v54
    %v99 = vadd.f32 %v98, %v55
    %v100 = vsel %vm63, %v56, 0.0
    %v101 = vadd.f32 %v99, %v100
    %102 = vadd.xlane.f32.xlu0 %v101
    %v103 = vpop.xlane.xlu0 %102
    %v104 = vadd.f32 %v57, %v58
    %v105 = vadd.f32 %v104, %v59
    %v106 = vsel %vm63, %v60, 0.0
    %v107 = vadd.f32 %v105, %v106
    %108 = vadd.xlane.f32.xlu0 %v107
    %v109 = vpop.xlane.xlu0 %108
    %p110 = scmp.eq.s32.totalorder 0, 0
    // Predicated region
    $region14: #{tpu_custom_call.1} parent=1 // pred_check
      %p111 = pneg %p110
    $region15: #{tpu_custom_call.1} parent=1 // pred_check_branch
      %113 = sbr.rel (%p111) target = $region17
    $region16: #{tpu_custom_call.1} parent=1 // pred_region
      %vm114 = vcmask 254976
      %115 = vst.msk [vmem:[#allocation2] sm:$0x3] %vm114, 0.0
    $region17: #{tpu_custom_call.1} parent=1 // pred_fallthru
      _
    %v116 = vld [vmem:[#allocation2] sm:$0x3]
    %v125 = vlaneseq
    %v126 = vand.u32 %v125, 127
    %v127 = vlaneseq
    %v128 = vshrl.u32 %v127, 7
    %v129 = vsub.s32 %v126, %v128
    %v130 = vrot.slane %v67, %v129
    %v131 = vadd.s32 %v126, 4294967288
    %v132 = vlaneseq
    %v133 = vshrl.u32 %v132, 7
    %v134 = vsub.s32 %v131, %v133
    %v135 = vrot.slane %v73, %v134
    %vm136 = vcmask 130112
    %v137 = vsel %vm136, %v135, %v130
    %v138 = vadd.s32 %v126, 4294967280
    %v139 = vlaneseq
    %v140 = vshrl.u32 %v139, 7
    %v141 = vsub.s32 %v138, %v140
    %v142 = vrot.slane %v79, %v141
    %vm143 = vcmask 195712
    %v144 = vsel %vm143, %v142, %v137
    %v145 = vadd.s32 %v126, 4294967272
    %v146 = vlaneseq
    %v147 = vshrl.u32 %v146, 7
    %v148 = vsub.s32 %v145, %v147
    %v149 = vrot.slane %v85, %v148
    %vm150 = vcmask 261312
    %v151 = vsel %vm150, %v149, %v144
    %v152 = vlaneseq
    %v153 = vshrl.u32 %v152, 7
    %v154 = vsub.s32 %v126, %v153
    %v155 = vrot.slane %v91, %v154
    %v156 = vlaneseq
    %v157 = vshrl.u32 %v156, 7
    %v158 = vsub.s32 %v131, %v157
    %v159 = vrot.slane %v97, %v158
    %v160 = vsel %vm136, %v159, %v155
    %v161 = vlaneseq
    %v162 = vshrl.u32 %v161, 7
    %v163 = vsub.s32 %v138, %v162
    %v164 = vrot.slane %v103, %v163
    %v165 = vsel %vm143, %v164, %v160
    %v166 = vlaneseq
    %v167 = vshrl.u32 %v166, 7
    %v168 = vsub.s32 %v145, %v167
    %v169 = vrot.slane %v109, %v168
    %v170 = vsel %vm150, %v169, %v165
    %vm171 = vcmask 1041409
    %v172 = vsel %vm171, %v170, %v151
    %v174 = vadd.f32 %v116, %v172
    %vm175 = vcmask 254976
    %176 = vst.msk [vmem:[#allocation2] sm:$0x3] %vm175, %v174
    // Predicated region
    $region18: #{tpu_custom_call.1} parent=1 // pred_check
      %p177 = pneg %p110
    $region19: #{tpu_custom_call.1} parent=1 // pred_check_branch
      %179 = sbr.rel (%p177) target = $region21
    $region20: #{tpu_custom_call.1} parent=1 // pred_region
      %v180 = vld [vmem:[#allocation2] sm:$0x3]
      %v181 = vmul.f32 %v180, 0.0025
      %v182 = vmul.f32 %v181, %v181
      %v183 = vsel %vm175, %v182, 0.0
      %184 = vadd.xlane.f32.xlu0 %v183
      %v185 = vpop.xlane.xlu0 %184
      %v186 = vrsqrt.pop %v185
      %v187 = vmul.f32 %v185, %v186
      %vm188 = vcmp.eq.f32.partialorder %v185, inf
      %v189 = vsel %vm188, %v185, %v187
      %vm190 = vcmp.eq.f32.partialorder %v185, 0.0
      %v191 = vand.u32 %v185, 2147483648
      %v192 = vsel %vm190, %v191, %v189
      %v193 = vmax.f32 %v192, 1e-12
      %v194 = vrcp.pop %v193
      %v195 = vmul.f32 %v181, %v194
      %196 = vst.msk [vmem:[#allocation7] sm:$0x3] %vm175, %v195
      %v197 = vld [vmem:[%s1] sm:$0xff]
      %v198 = vld [vmem:[%s1 + $0x8] sm:$0xff]
      %v199 = vld [vmem:[%s1 + $0x10] sm:$0xff]
      %v200 = vld [vmem:[%s1 + $0x18] sm:$0xff]
      %vm201 = vcmask 261120
      %v203 = vsel %vm201, %v195, 0
      %205 = vmatprep.subr.mxu0 0.0
      %206 = vmatpush1.msra.mxu0 0.0
      %207 = vmatprep.subr.mxu0 0.0
      %208 = vmatpush1.msra.mxu0 0.0
      %209 = vmatprep.subr.mxu0 0.0
      %210 = vmatpush1.msra.mxu0 0.0
      %211 = vmatprep.subr.mxu0 0.0
      %212 = vmatpush1.msra.mxu0 0.0
      %213 = vmatprep.subr.mxu0 0.0
      %214 = vmatpush1.msra.mxu0 0.0
      %215 = vmatprep.subr.mxu0 0.0
      %216 = vmatpush1.msra.mxu0 0.0
      %217 = vmatprep.subr.mxu0 0.0
      %218 = vmatpush1.msra.mxu0 0.0
      %219 = vmatprep.subr.mxu0 0.0
      %220 = vmatpush1.msra.mxu0 0.0
      %221 = vmatprep.subr.mxu0 0.0
      %222 = vmatpush1.msra.mxu0 0.0
      %223 = vmatprep.subr.mxu0 0.0
      %224 = vmatpush1.msra.mxu0 0.0
      %225 = vmatprep.subr.mxu0 0.0
      %226 = vmatpush1.msra.mxu0 0.0
      %227 = vmatprep.subr.mxu0 0.0
      %228 = vmatpush1.msra.mxu0 0.0
      %229 = vmatprep.subr.mxu0 0.0
      %230 = vmatpush1.msra.mxu0 %v200
      %231 = vmatprep.subr.mxu0 0.0
      %232 = vmatpush1.msra.mxu0 %v199
      %233 = vmatprep.subr.mxu0 0.0
      %234 = vmatpush1.msra.mxu0 %v198
      %235 = vmatprep.subr.mxu0 0.0
      %236 = vmatpush1.msra.mxu0 %v197
      %237 = vmatprep.subr.mxu0 0.0
      %238 = vmatpush2.msra.mxu0 0.0
      %239 = vmatprep.subr.mxu0 0.0
      %240 = vmatpush2.msra.mxu0 0.0
      %241 = vmatprep.subr.mxu0 0.0
      %242 = vmatpush2.msra.mxu0 0.0
      %243 = vmatprep.subr.mxu0 0.0
      %244 = vmatpush2.msra.mxu0 0.0
      %245 = vmatprep.subr.mxu0 0.0
      %246 = vmatpush2.msra.mxu0 0.0
      %247 = vmatprep.subr.mxu0 0.0
      %248 = vmatpush2.msra.mxu0 0.0
      %249 = vmatprep.subr.mxu0 0.0
      %250 = vmatpush2.msra.mxu0 0.0
      %251 = vmatprep.subr.mxu0 0.0
      %252 = vmatpush2.msra.mxu0 0.0
      %253 = vmatprep.subr.mxu0 0.0
      %254 = vmatpush2.msra.mxu0 0.0
      %255 = vmatprep.subr.mxu0 0.0
      %256 = vmatpush2.msra.mxu0 0.0
      %257 = vmatprep.subr.mxu0 0.0
      %258 = vmatpush2.msra.mxu0 0.0
      %259 = vmatprep.subr.mxu0 0.0
      %260 = vmatpush2.msra.mxu0 0.0
      %261 = vmatprep.subr.mxu0 0.0
      %262 = vmatpush2.msra.mxu0 0.0
      %263 = vmatprep.subr.mxu0 0.0
      %264 = vmatpush2.msra.mxu0 0.0
      %265 = vmatprep.subr.mxu0 0.0
      %266 = vmatpush2.msra.mxu0 0.0
      %267 = vmatprep.subr.mxu0 0.0
      %268 = vmatpush2.msra.mxu0 0.0
      %269 = vmatprep.mubr.f32.mxu0 0.0
      %270 = vmatmul.mubr.f32.gmra.mxu0 %v203
      %v271 = vpop.f32.mrf.mxu0
      %v272 = vadd.f32 0.0, %v271
      %v273 = vpop.f32.mrf.mxu0
      %274 = vdwg.mxu0
      %vm275 = vcmask 58368
      %276 = vst.msk [vmem:[#allocation6] sm:$0x3] %vm275, %v272
    $region21: #{tpu_custom_call.1} parent=1 // pred_fallthru
      _
    // Predicated region
    $region22: #{tpu_custom_call.1} parent=1 // pred_check
      _
    $region23: #{tpu_custom_call.1} parent=1 // pred_check_branch
      %278 = sbr.rel (0) target = $region25
    $region24: #{tpu_custom_call.1} parent=1 // pred_region
      %s280 = ssub.s32 32, 32
      %281 = vsyncadd [#allocation5], %s280
      %s283 = sshll.u32 [#allocation6], 4
      %s284 = int_to_ptr.vmem [resolvable:$true] %s283
      %286 = dma.vmem_to_hbm [thread:$0]  %s284, 32, %s2, [#allocation5]
    $region25: #{tpu_custom_call.1} parent=1 // pred_fallthru
      _
    // Predicated region
    $region26: #{tpu_custom_call.1} parent=1 // pred_check
      _
    $region27: #{tpu_custom_call.1} parent=1 // pred_check_branch
      %288 = sbr.rel (0) target = $region29
    $region28: #{tpu_custom_call.1} parent=1 // pred_region
      %s290 = ssub.s32 32, 32
      %291 = vsyncadd [#allocation8], %s290
      %s293 = sshll.u32 [#allocation7], 4
      %s294 = int_to_ptr.vmem [resolvable:$true] %s293
      %296 = dma.vmem_to_hbm [thread:$0]  %s294, 32, %s3, [#allocation8]
    $region29: #{tpu_custom_call.1} parent=1 // pred_fallthru
      _
    // Predicated region
    $region30: #{tpu_custom_call.1} parent=1 // pred_check
      _
    $region31: #{tpu_custom_call.1} parent=1 // pred_check_branch
      %298 = sbr.rel (0) target = $region33
    $region32: #{tpu_custom_call.1} parent=1 // pred_region
      %299 = dma.done [#allocation5], 32
    $region33: #{tpu_custom_call.1} parent=1 // pred_fallthru
      _
    // Predicated region
    $region34: #{tpu_custom_call.1} parent=1 // pred_check
      _
    $region35: #{tpu_custom_call.1} parent=1 // pred_check_branch
      %301 = sbr.rel (0) target = $region37
    $region36: #{tpu_custom_call.1} parent=1 // pred_region
      %302 = dma.done [#allocation8], 32
    $region37: #{tpu_custom_call.1} parent=1 // pred_fallthru
      _
    %303 = vsyncpa [#allocation4], 1
    %304 = vsyncpa [#allocation5], 1
    %305 = vsyncpa [#allocation8], 1

</llo_original>
